<compile_context>
chip_gen: v6e
topology: v6e:2x2x1
jax: 0.10.0
libtpu: 0.0.40
codegen_flags: <defaults>
</compile_context>

<pallas_src>
import functools

import jax
import jax.numpy as jnp
from jax.experimental import pallas as pl
from jax.experimental.pallas import tpu as pltpu

# Logical (PyTorch) sizes.
SEQ_LEN = 100      # config.sequence_length  (f1 in_features)
HIDDEN = 60        # f1 out_features
OUT = 120          # config.mlp1_output_size (f2 out_features)

# Hidden dim padded to a full 128-lane vreg so the intermediate h is lane-dense.
HID_P = 128

MAX_BLOCK_ROWS = 2048   # per-tile rows; x tile 2048x100xf32 (~0.8 MiB) + out tile
                        # 2048x120xf32 (~1 MiB), double-buffered -> far under the
                        # 32 MiB scoped VMEM default on every generation.


def _round_up(n: int, m: int) -> int:
    return ((n + m - 1) // m) * m


def mlp1_kernel(x_ref, w1_ref, b1_ref, w2_ref, b2_ref, o_ref):
    """One batch tile: y = ReLU(x @ W1 + b1) @ W2 + b2 (f32 accumulation)."""
    # Cast to the weight dtype (bf16 or f32) in-kernel, right before the MXU.
    x = x_ref[...].astype(w1_ref.dtype)
    h = jnp.dot(x, w1_ref[...], preferred_element_type=jnp.float32)
    # Bias + ReLU strictly in f32 on the VPU (v5e has no bf16 VPU).
    h = jnp.maximum(h + b1_ref[...], 0.0)
    y = jnp.dot(h.astype(w2_ref.dtype), w2_ref[...],
                preferred_element_type=jnp.float32)
    o_ref[...] = (y + b2_ref[...]).astype(o_ref.dtype)


@functools.partial(jax.jit, static_argnames=("use_bf16",))
def mlp1_forward(x, w1, b1, w2, b2, *, use_bf16=True):
    """x: (B, 100) f32 -> (B, 120) f32.

    Weights are (in, out) = transpose of PyTorch's (out, in) layout.  Only the
    tiny weights/biases are padded (hidden dim 60 -> 128); x and the output are
    used at their logical shapes so the kernel is a single HBM pass over the data.
    """
    B = x.shape[0]
    compute_dtype = jnp.bfloat16 if use_bf16 else jnp.float32

    # ---- batch tiling -------------------------------------------------------
    # Aim for >= 2 tiles on large batches (v7x has 2 TensorCores on the
    # "parallel" axis); keep tiles sublane-aligned; let the last tile be ragged.
    align = 16 if use_bf16 else 8
    if B <= align:
        TB = B                                   # block dim == full array dim: legal
    else:
        TB = min(MAX_BLOCK_ROWS, _round_up(-(-B // 2), align))
    grid = (pl.cdiv(B, TB),)

    # ---- resident weights (hidden dim zero-padded; padded lanes contribute 0)
    w1_p = jnp.pad(w1, ((0, 0), (0, HID_P - HIDDEN))).astype(compute_dtype)
    b1_p = jnp.pad(b1, ((0, 0), (0, HID_P - HIDDEN))).astype(jnp.float32)
    w2_p = jnp.pad(w2, ((0, HID_P - HIDDEN), (0, 0))).astype(compute_dtype)
    b2_f = b2.astype(jnp.float32)

    cost = pl.CostEstimate(
        flops=2 * B * (SEQ_LEN * HID_P + HID_P * OUT),
        transcendentals=0,
        bytes_accessed=B * 4 * (SEQ_LEN + OUT) + 4 * (SEQ_LEN * HID_P + HID_P * OUT),
    )

    out = pl.pallas_call(
        mlp1_kernel,
        out_shape=jax.ShapeDtypeStruct((B, OUT), jnp.float32),
        grid=grid,
        in_specs=[
            pl.BlockSpec((TB, SEQ_LEN), lambda i: (i, 0)),     # x: raw (B,100), streamed
            pl.BlockSpec((SEQ_LEN, HID_P), lambda i: (0, 0)),  # W1: resident
            pl.BlockSpec((1, HID_P), lambda i: (0, 0)),        # b1: resident
            pl.BlockSpec((HID_P, OUT), lambda i: (0, 0)),      # W2: resident
            pl.BlockSpec((1, OUT), lambda i: (0, 0)),          # b2: resident
        ],
        out_specs=pl.BlockSpec((TB, OUT), lambda i: (i, 0)),   # direct (B,120) store
        compiler_params=pltpu.CompilerParams(
            dimension_semantics=("parallel",),
        ),
        cost_estimate=cost,
    )(x, w1_p, b1_p, w2_p, b2_f)

    return out


def init_params(key):
    """Deterministic init mimicking PyTorch nn.Linear default (uniform +-1/sqrt(fan_in))."""
    k1, k2, k3, k4 = jax.random.split(key, 4)
    bound1 = 1.0 / (SEQ_LEN ** 0.5)
    bound2 = 1.0 / (HIDDEN ** 0.5)
    # Stored as (in, out) = transpose of PyTorch's (out, in) weight layout.
    w1 = jax.random.uniform(k1, (SEQ_LEN, HIDDEN), jnp.float32, -bound1, bound1)
    b1 = jax.random.uniform(k2, (1, HIDDEN), jnp.float32, -bound1, bound1)
    w2 = jax.random.uniform(k3, (HIDDEN, OUT), jnp.float32, -bound2, bound2)
    b2 = jax.random.uniform(k4, (1, OUT), jnp.float32, -bound2, bound2)
    return w1, b1, w2, b2


if __name__ == "__main__":
    key = jax.random.PRNGKey(0)
    k_x, k_p = jax.random.split(key)

    B = 8
    x = jax.random.normal(k_x, (B, SEQ_LEN), jnp.float32)
    w1, b1, w2, b2 = init_params(k_p)

    # ---- f32 path: exact check against plain-JAX reference ------------------
    out_f32 = jax.block_until_ready(mlp1_forward(x, w1, b1, w2, b2, use_bf16=False))
    ref_f32 = jnp.maximum(x @ w1 + b1, 0.0) @ w2 + b2
    assert out_f32.shape == (B, OUT)
    assert jnp.allclose(out_f32, ref_f32, atol=1e-5, rtol=1e-5)

    # ---- bf16-operand path (default, fast on v6e/v7x MXU) -------------------
    out_bf16 = jax.block_until_ready(mlp1_forward(x, w1, b1, w2, b2, use_bf16=True))
    # Reference using the same bf16 quantization of the matmul operands.
    h_ref = jnp.maximum(
        jnp.dot(x.astype(jnp.bfloat16), w1.astype(jnp.bfloat16),
                preferred_element_type=jnp.float32) + b1, 0.0)
    ref_bf16 = jnp.dot(h_ref.astype(jnp.bfloat16), w2.astype(jnp.bfloat16),
                       preferred_element_type=jnp.float32) + b2
    assert out_bf16.shape == (B, OUT)
    assert jnp.allclose(out_bf16, ref_bf16, atol=1e-3, rtol=1e-3)
    # bf16 operands stay close to the full-f32 math for this small MLP.
    assert jnp.allclose(out_bf16, ref_f32, atol=5e-2, rtol=5e-2)

    print("KERNEL_OK")
</pallas_src>

<mosaic_0001>
module attributes {stable_mosaic.version = 11 : i64} {
  func.func @mlp1_kernel(%arg0: i32, %arg1: memref<8x100xf32, #tpu.memory_space<vmem>>, %arg2: memref<100x128xf32, #tpu.memory_space<vmem>>, %arg3: memref<1x128xf32, #tpu.memory_space<vmem>>, %arg4: memref<128x120xf32, #tpu.memory_space<vmem>>, %arg5: memref<1x120xf32, #tpu.memory_space<vmem>>, %arg6: memref<8x120xf32, #tpu.memory_space<vmem>>) attributes {dimension_semantics = [#tpu.dimension_semantics<parallel>], iteration_bounds = array<i64: 1>, scalar_prefetch = 0 : i64, scratch_operands = 0 : i64, tpu.core_type = #tpu.core_type<tc>, window_params = [{transform_indices = @transform_0, window_bounds = array<i64: 8, 100>}, {pipeline_mode = #tpu.pipeline_mode<synchronous>, transform_indices = @transform_1, window_bounds = array<i64: 100, 128>}, {pipeline_mode = #tpu.pipeline_mode<synchronous>, transform_indices = @transform_2, window_bounds = array<i64: 1, 128>}, {pipeline_mode = #tpu.pipeline_mode<synchronous>, transform_indices = @transform_3, window_bounds = array<i64: 128, 120>}, {pipeline_mode = #tpu.pipeline_mode<synchronous>, transform_indices = @transform_4, window_bounds = array<i64: 1, 120>}, {transform_indices = @transform_5, window_bounds = array<i64: 8, 120>}]} {
    %c0 = arith.constant 0 : index
    %c0_0 = arith.constant 0 : index
    %0 = vector.load %arg1[%c0, %c0_0] : memref<8x100xf32, #tpu.memory_space<vmem>>, vector<8x100xf32>
    %c0_1 = arith.constant 0 : index
    %c0_2 = arith.constant 0 : index
    %1 = vector.load %arg2[%c0_1, %c0_2] : memref<100x128xf32, #tpu.memory_space<vmem>>, vector<100x128xf32>
    %cst = arith.constant dense<0.000000e+00> : vector<8x128xf32>
    %2 = tpu.matmul %0, %1, %cst {dimension_numbers = #tpu.dot_dimension_numbers<[1], [0], [0], [1], [0, 0, 1, 1], [], []>} : vector<8x100xf32>, vector<100x128xf32>, vector<8x128xf32> -> vector<8x128xf32>
    %c0_3 = arith.constant 0 : index
    %c0_4 = arith.constant 0 : index
    %3 = vector.load %arg3[%c0_3, %c0_4] : memref<1x128xf32, #tpu.memory_space<vmem>>, vector<1x128xf32>
    %4 = vector.broadcast %3 : vector<1x128xf32> to vector<8x128xf32>
    %5 = arith.addf %2, %4 : vector<8x128xf32>
    %cst_5 = arith.constant 0.000000e+00 : f32
    %6 = vector.broadcast %cst_5 : f32 to vector<8x128xf32>
    %7 = arith.maximumf %5, %6 : vector<8x128xf32>
    %c0_6 = arith.constant 0 : index
    %c0_7 = arith.constant 0 : index
    %8 = vector.load %arg4[%c0_6, %c0_7] : memref<128x120xf32, #tpu.memory_space<vmem>>, vector<128x120xf32>
    %cst_8 = arith.constant dense<0.000000e+00> : vector<8x120xf32>
    %9 = tpu.matmul %7, %8, %cst_8 {dimension_numbers = #tpu.dot_dimension_numbers<[1], [0], [0], [1], [0, 0, 1, 1], [], []>} : vector<8x128xf32>, vector<128x120xf32>, vector<8x120xf32> -> vector<8x120xf32>
    %c0_9 = arith.constant 0 : index
    %c0_10 = arith.constant 0 : index
    %10 = vector.load %arg5[%c0_9, %c0_10] : memref<1x120xf32, #tpu.memory_space<vmem>>, vector<1x120xf32>
    %11 = vector.broadcast %10 : vector<1x120xf32> to vector<8x120xf32>
    %12 = arith.addf %9, %11 : vector<8x120xf32>
    %c0_11 = arith.constant 0 : index
    %c0_12 = arith.constant 0 : index
    %13 = vector.load %arg6[%c0_11, %c0_12] : memref<8x120xf32, #tpu.memory_space<vmem>>, vector<8x120xf32>
    tpu.vector_store %arg6[%c0_11, %c0_12], %12 {strides = array<i32>} : memref<8x120xf32, #tpu.memory_space<vmem>>, vector<8x120xf32>,
    return
  }
  func.func @transform_0(%arg0: i32) -> (i32, i32) {
    %c0_i32 = arith.constant 0 : i32
    %c0_i32_0 = arith.constant 0 : i32
    return %arg0, %c0_i32 : i32, i32
  }
  func.func @transform_1(%arg0: i32) -> (i32, i32) {
    %c0_i32 = arith.constant 0 : i32
    %c0_i32_0 = arith.constant 0 : i32
    %c0_i32_1 = arith.constant 0 : i32
    return %c0_i32, %c0_i32_0 : i32, i32
  }
  func.func @transform_2(%arg0: i32) -> (i32, i32) {
    %c0_i32 = arith.constant 0 : i32
    %c0_i32_0 = arith.constant 0 : i32
    %c0_i32_1 = arith.constant 0 : i32
    return %c0_i32, %c0_i32_0 : i32, i32
  }
  func.func @transform_3(%arg0: i32) -> (i32, i32) {
    %c0_i32 = arith.constant 0 : i32
    %c0_i32_0 = arith.constant 0 : i32
    %c0_i32_1 = arith.constant 0 : i32
    return %c0_i32, %c0_i32_0 : i32, i32
  }
  func.func @transform_4(%arg0: i32) -> (i32, i32) {
    %c0_i32 = arith.constant 0 : i32
    %c0_i32_0 = arith.constant 0 : i32
    %c0_i32_1 = arith.constant 0 : i32
    return %c0_i32, %c0_i32_0 : i32, i32
  }
  func.func @transform_5(%arg0: i32) -> (i32, i32) {
    %c0_i32 = arith.constant 0 : i32
    %c0_i32_0 = arith.constant 0 : i32
    return %arg0, %c0_i32 : i32, i32
  }
}

</mosaic_0001>

<llo_original>
// kernel: mlp1_forward.1
$region0: #{mlp1_forward.1}
  #allocation0 [shape = 'u32[]', space=smem, size = 0x4, offset = 0x4, fixed_abs, tag = 'smem constant byte address 0x4 - core index']
  #allocation1 [shape = 'u32[144,128]{1,0:T(1,128)}', space=vmem, size = 0x12000, scoped, tag = 'internal scratch']
  %s0 = inlined_call_operand.vmem [shape: f32[8,100], index: 0, kind: input, shape index: {}]
  %s1 = inlined_call_operand.vmem [shape: f32[100,128], index: 1, kind: input, shape index: {}]
  %s2 = inlined_call_operand.vmem [shape: f32[1,128], index: 2, kind: input, shape index: {}]
  %s3 = inlined_call_operand.vmem [shape: f32[128,120], index: 3, kind: input, shape index: {}]
  %s4 = inlined_call_operand.vmem [shape: f32[1,120], index: 4, kind: input, shape index: {}]
  %s5 = inlined_call_operand.hbm [shape: f32[8,120], index: 5, kind: output, shape index: {}]
  %s6 = sld [smem:[#allocation0]]
  $region30: #{mlp1_forward.1} parent=0
    _
  %s8 = ssub.s32 1, %s6
  %s9 = scalar_select 0, %s8, %s6
  $region1: #{mlp1_forward.1} parent=0
    #allocation2 [shape = 'u8[4096]{0}', space=vmem, size = 0x1000, scoped, tag = 'output window, operand 0, single buffered']
    #allocation3 [shape = 's32[1]{0}', space=sflag, size = 0x4, scoped, tag = 'scoped memory for mlp1_forward.1']
    %10 = vsyncpa [#allocation3], 0
    // Predicated region
    $region2: #{mlp1_forward.1} parent=1 // pred_check
      _
    $region3: #{mlp1_forward.1} parent=1 // pred_check_branch
      %12 = sbr.rel (0) target = $region5
    $region4: #{mlp1_forward.1} parent=1 // pred_region
      _
    $region5: #{mlp1_forward.1} parent=1 // pred_fallthru
      _
    // Predicated region
    $region6: #{mlp1_forward.1} parent=1 // pred_check
      _
    $region7: #{mlp1_forward.1} parent=1 // pred_check_branch
      %14 = sbr.rel (0) target = $region9
    $region8: #{mlp1_forward.1} parent=1 // pred_region
      _
    $region9: #{mlp1_forward.1} parent=1 // pred_fallthru
      _
    // Predicated region
    $region10: #{mlp1_forward.1} parent=1 // pred_check
      _
    $region11: #{mlp1_forward.1} parent=1 // pred_check_branch
      %16 = sbr.rel (0) target = $region13
    $region12: #{mlp1_forward.1} parent=1 // pred_region
      _
    $region13: #{mlp1_forward.1} parent=1 // pred_fallthru
      _
    // Predicated region
    $region14: #{mlp1_forward.1} parent=1 // pred_check
      _
    $region15: #{mlp1_forward.1} parent=1 // pred_check_branch
      %18 = sbr.rel (0) target = $region17
    $region16: #{mlp1_forward.1} parent=1 // pred_region
      _
    $region17: #{mlp1_forward.1} parent=1 // pred_fallthru
      _
    // Predicated region
    $region18: #{mlp1_forward.1} parent=1 // pred_check
      _
    $region19: #{mlp1_forward.1} parent=1 // pred_check_branch
      %20 = sbr.rel (0) target = $region21
    $region20: #{mlp1_forward.1} parent=1 // pred_region
      _
    $region21: #{mlp1_forward.1} parent=1 // pred_fallthru
      _
    %v21 = vld [vmem:[%s0] sm:$0xff]
    %v22 = vld [vmem:[%s1] sm:$0xff]
    %v23 = vld [vmem:[%s1 + $0x8] sm:$0xff]
    %v24 = vld [vmem:[%s1 + $0x10] sm:$0xff]
    %v25 = vld [vmem:[%s1 + $0x18] sm:$0xff]
    %v26 = vld [vmem:[%s1 + $0x20] sm:$0xff]
    %v27 = vld [vmem:[%s1 + $0x28] sm:$0xff]
    %v28 = vld [vmem:[%s1 + $0x30] sm:$0xff]
    %v29 = vld [vmem:[%s1 + $0x38] sm:$0xff]
    %v30 = vld [vmem:[%s1 + $0x40] sm:$0xff]
    %v31 = vld [vmem:[%s1 + $0x48] sm:$0xff]
    %v32 = vld [vmem:[%s1 + $0x50] sm:$0xff]
    %v33 = vld [vmem:[%s1 + $0x58] sm:$0xff]
    %v34 = vld [vmem:[%s1 + $0x60] sm:$0xf]
    %v35 = vld [vmem:[%s2] sm:$0x1]
    %v37 = vlaneseq
    %v38 = vshrl.u32 %v37, 7
    %v39 = vsub.s32 0, %v38
    %v40 = vrot.slane %v35, %v39
    %vm42 = vcmask 818176
    %v44 = vsel %vm42, %v21, 0
    %vm46 = vcmask 1043456
    %v48 = vsel %vm46, %v34, 0
    %50 = vmatprep.subr.mxu0 0.0
    %51 = vmatpush1.msra.mxu0 0.0
    %52 = vmatprep.subr.mxu0 0.0
    %53 = vmatpush1.msra.mxu0 0.0
    %54 = vmatprep.subr.mxu0 0.0
    %55 = vmatpush1.msra.mxu0 0.0
    %56 = vmatprep.subr.mxu0 0.0
    %57 = vmatpush1.msra.mxu0 %v48
    %58 = vmatprep.subr.mxu0 0.0
    %59 = vmatpush1.msra.mxu0 %v33
    %60 = vmatprep.subr.mxu0 0.0
    %61 = vmatpush1.msra.mxu0 %v32
    %62 = vmatprep.subr.mxu0 0.0
    %63 = vmatpush1.msra.mxu0 %v31
    %64 = vmatprep.subr.mxu0 0.0
    %65 = vmatpush1.msra.mxu0 %v30
    %66 = vmatprep.subr.mxu0 0.0
    %67 = vmatpush1.msra.mxu0 %v29
    %68 = vmatprep.subr.mxu0 0.0
    %69 = vmatpush1.msra.mxu0 %v28
    %70 = vmatprep.subr.mxu0 0.0
    %71 = vmatpush1.msra.mxu0 %v27
    %72 = vmatprep.subr.mxu0 0.0
    %73 = vmatpush1.msra.mxu0 %v26
    %74 = vmatprep.subr.mxu0 0.0
    %75 = vmatpush1.msra.mxu0 %v25
    %76 = vmatprep.subr.mxu0 0.0
    %77 = vmatpush1.msra.mxu0 %v24
    %78 = vmatprep.subr.mxu0 0.0
    %79 = vmatpush1.msra.mxu0 %v23
    %80 = vmatprep.subr.mxu0 0.0
    %81 = vmatpush1.msra.mxu0 %v22
    %82 = vmatprep.subr.mxu0 0.0
    %83 = vmatpush2.msra.mxu0 0.0
    %84 = vmatprep.subr.mxu0 0.0
    %85 = vmatpush2.msra.mxu0 0.0
    %86 = vmatprep.subr.mxu0 0.0
    %87 = vmatpush2.msra.mxu0 0.0
    %88 = vmatprep.subr.mxu0 0.0
    %89 = vmatpush2.msra.mxu0 0.0
    %90 = vmatprep.subr.mxu0 0.0
    %91 = vmatpush2.msra.mxu0 0.0
    %92 = vmatprep.subr.mxu0 0.0
    %93 = vmatpush2.msra.mxu0 0.0
    %94 = vmatprep.subr.mxu0 0.0
    %95 = vmatpush2.msra.mxu0 0.0
    %96 = vmatprep.subr.mxu0 0.0
    %97 = vmatpush2.msra.mxu0 0.0
    %98 = vmatprep.subr.mxu0 0.0
    %99 = vmatpush2.msra.mxu0 0.0
    %100 = vmatprep.subr.mxu0 0.0
    %101 = vmatpush2.msra.mxu0 0.0
    %102 = vmatprep.subr.mxu0 0.0
    %103 = vmatpush2.msra.mxu0 0.0
    %104 = vmatprep.subr.mxu0 0.0
    %105 = vmatpush2.msra.mxu0 0.0
    %106 = vmatprep.subr.mxu0 0.0
    %107 = vmatpush2.msra.mxu0 0.0
    %108 = vmatprep.subr.mxu0 0.0
    %109 = vmatpush2.msra.mxu0 0.0
    %110 = vmatprep.subr.mxu0 0.0
    %111 = vmatpush2.msra.mxu0 0.0
    %112 = vmatprep.subr.mxu0 0.0
    %113 = vmatpush2.msra.mxu0 0.0
    %114 = vmatprep.mubr.f32.mxu0 0.0
    %115 = vmatmul.mubr.f32.gmra.mxu0 %v44
    %v116 = vpop.f32.mrf.mxu0
    %v117 = vadd.f32 %v40, %v116
    %v118 = vpop.f32.mrf.mxu0
    %119 = vdwg.mxu0
    %v120 = vmax.f32 %v117, 0.0
    %v121 = vld [vmem:[%s3] sm:$0xff]
    %v122 = vld [vmem:[%s3 + $0x8] sm:$0xff]
    %v123 = vld [vmem:[%s3 + $0x10] sm:$0xff]
    %v124 = vld [vmem:[%s3 + $0x18] sm:$0xff]
    %v125 = vld [vmem:[%s3 + $0x20] sm:$0xff]
    %v126 = vld [vmem:[%s3 + $0x28] sm:$0xff]
    %v127 = vld [vmem:[%s3 + $0x30] sm:$0xff]
    %v128 = vld [vmem:[%s3 + $0x38] sm:$0xff]
    %v129 = vld [vmem:[%s3 + $0x40] sm:$0xff]
    %v130 = vld [vmem:[%s3 + $0x48] sm:$0xff]
    %v131 = vld [vmem:[%s3 + $0x50] sm:$0xff]
    %v132 = vld [vmem:[%s3 + $0x58] sm:$0xff]
    %v133 = vld [vmem:[%s3 + $0x60] sm:$0xff]
    %v134 = vld [vmem:[%s3 + $0x68] sm:$0xff]
    %v135 = vld [vmem:[%s3 + $0x70] sm:$0xff]
    %v136 = vld [vmem:[%s3 + $0x78] sm:$0xff]
    %v137 = vld [vmem:[%s4] sm:$0x1]
    %v139 = vlaneseq
    %v140 = vshrl.u32 %v139, 7
    %v141 = vsub.s32 0, %v140
    %v142 = vrot.slane %v137, %v141
    %144 = vmatprep.subr.mxu0 0.0
    %145 = vmatpush1.msra.mxu0 %v136
    %146 = vmatprep.subr.mxu0 0.0
    %147 = vmatpush1.msra.mxu0 %v135
    %148 = vmatprep.subr.mxu0 0.0
    %149 = vmatpush1.msra.mxu0 %v134
    %150 = vmatprep.subr.mxu0 0.0
    %151 = vmatpush1.msra.mxu0 %v133
    %152 = vmatprep.subr.mxu0 0.0
    %153 = vmatpush1.msra.mxu0 %v132
    %154 = vmatprep.subr.mxu0 0.0
    %155 = vmatpush1.msra.mxu0 %v131
    %156 = vmatprep.subr.mxu0 0.0
    %157 = vmatpush1.msra.mxu0 %v130
    %158 = vmatprep.subr.mxu0 0.0
    %159 = vmatpush1.msra.mxu0 %v129
    %160 = vmatprep.subr.mxu0 0.0
    %161 = vmatpush1.msra.mxu0 %v128
    %162 = vmatprep.subr.mxu0 0.0
    %163 = vmatpush1.msra.mxu0 %v127
    %164 = vmatprep.subr.mxu0 0.0
    %165 = vmatpush1.msra.mxu0 %v126
    %166 = vmatprep.subr.mxu0 0.0
    %167 = vmatpush1.msra.mxu0 %v125
    %168 = vmatprep.subr.mxu0 0.0
    %169 = vmatpush1.msra.mxu0 %v124
    %170 = vmatprep.subr.mxu0 0.0
    %171 = vmatpush1.msra.mxu0 %v123
    %172 = vmatprep.subr.mxu0 0.0
    %173 = vmatpush1.msra.mxu0 %v122
    %174 = vmatprep.subr.mxu0 0.0
    %175 = vmatpush1.msra.mxu0 %v121
    %176 = vmatprep.subr.mxu0 0.0
    %177 = vmatpush2.msra.mxu0 0.0
    %178 = vmatprep.subr.mxu0 0.0
    %179 = vmatpush2.msra.mxu0 0.0
    %180 = vmatprep.subr.mxu0 0.0
    %181 = vmatpush2.msra.mxu0 0.0
    %182 = vmatprep.subr.mxu0 0.0
    %183 = vmatpush2.msra.mxu0 0.0
    %184 = vmatprep.subr.mxu0 0.0
    %185 = vmatpush2.msra.mxu0 0.0
    %186 = vmatprep.subr.mxu0 0.0
    %187 = vmatpush2.msra.mxu0 0.0
    %188 = vmatprep.subr.mxu0 0.0
    %189 = vmatpush2.msra.mxu0 0.0
    %190 = vmatprep.subr.mxu0 0.0
    %191 = vmatpush2.msra.mxu0 0.0
    %192 = vmatprep.subr.mxu0 0.0
    %193 = vmatpush2.msra.mxu0 0.0
    %194 = vmatprep.subr.mxu0 0.0
    %195 = vmatpush2.msra.mxu0 0.0
    %196 = vmatprep.subr.mxu0 0.0
    %197 = vmatpush2.msra.mxu0 0.0
    %198 = vmatprep.subr.mxu0 0.0
    %199 = vmatpush2.msra.mxu0 0.0
    %200 = vmatprep.subr.mxu0 0.0
    %201 = vmatpush2.msra.mxu0 0.0
    %202 = vmatprep.subr.mxu0 0.0
    %203 = vmatpush2.msra.mxu0 0.0
    %204 = vmatprep.subr.mxu0 0.0
    %205 = vmatpush2.msra.mxu0 0.0
    %206 = vmatprep.subr.mxu0 0.0
    %207 = vmatpush2.msra.mxu0 0.0
    %208 = vmatprep.mubr.f32.mxu0 0.0
    %209 = vmatmul.mubr.f32.gmra.mxu0 %v120
    %v210 = vpop.f32.mrf.mxu0
    %v211 = vadd.f32 %v142, %v210
    %v212 = vpop.f32.mrf.mxu0
    %213 = vdwg.mxu0
    %vm214 = vcmask 982016
    %215 = vst.msk [vmem:[#allocation2] sm:$0xff] %vm214, %v211
    // Predicated region
    $region22: #{mlp1_forward.1} parent=1 // pred_check
      _
    $region23: #{mlp1_forward.1} parent=1 // pred_check_branch
      %217 = sbr.rel (0) target = $region25
    $region24: #{mlp1_forward.1} parent=1 // pred_region
      %s219 = ssub.s32 128, 128
      %220 = vsyncadd [#allocation3], %s219
      %s222 = sshll.u32 [#allocation2], 4
      %s223 = int_to_ptr.vmem [resolvable:$true] %s222
      %225 = dma.vmem_to_hbm [thread:$0]  %s223, 128, %s5, [#allocation3]
    $region25: #{mlp1_forward.1} parent=1 // pred_fallthru
      _
    // Predicated region
    $region26: #{mlp1_forward.1} parent=1 // pred_check
      _
    $region27: #{mlp1_forward.1} parent=1 // pred_check_branch
      %227 = sbr.rel (0) target = $region29
    $region28: #{mlp1_forward.1} parent=1 // pred_region
      %228 = dma.done [#allocation3], 128
    $region29: #{mlp1_forward.1} parent=1 // pred_fallthru
      _
    %229 = vsyncpa [#allocation3], 1

</llo_original>
